<compile_context>
chip_gen: v7x
topology: tpu7x:2x2x1
jax: 0.10.0
libtpu: 0.0.40
codegen_flags: <defaults>
</compile_context>

<pallas_src>
import jax
import jax.numpy as jnp
from jax.experimental import pallas as pl
from jax.experimental.pallas import tpu as pltpu


def gcn_kernel(a_ref, xk_ref, xi_ref, w_ref, b_ref, o_ref, acc_ref):
    # a_ref : (tm, tk)   bf16 adjacency tile  A[i-tile, k-tile]
    # xk_ref: (tk, Dp)   bf16 X rows for the reduction (k-tile)
    # xi_ref: (tm, Dp)   bf16 X rows for the root term (i-tile, resident across k)
    # w_ref : (2*Dp, Dp) f32  stacked [W_rel^T ; W_root^T]
    # b_ref : (1, Dp)    f32  bias (padded)
    # o_ref : (tm, Dp)   f32  output tile (lane-dense, padded feature dim)
    # acc   : (tm, Dp)   f32  neighbor-aggregation accumulator
    k = pl.program_id(1)

    @pl.when(k == 0)
    def _init():
        acc_ref[...] = jnp.zeros_like(acc_ref)

    # Neighbor aggregation: acc += A[i, k] @ X[k]   (bf16 inputs, f32 accumulate)
    acc_ref[...] += jnp.dot(a_ref[...], xk_ref[...],
                            preferred_element_type=jnp.float32)

    @pl.when(k == pl.num_programs(1) - 1)
    def _epilogue():
        # Fused weight matmul: [agg | x_i] @ [[W_rel^T], [W_root^T]]
        lhs = jnp.concatenate(
            [acc_ref[...], xi_ref[...].astype(jnp.float32)], axis=1)  # (tm, 2*Dp)
        out = jnp.dot(lhs, w_ref[...], preferred_element_type=jnp.float32)
        out = out + b_ref[...]                      # bias (once per output tile)
        o_ref[...] = jnp.maximum(out, 0.0).astype(o_ref.dtype)


def _round_up(v, m):
    return (v + m - 1) // m * m


def gcn_forward(adj, x, w_rel, b_rel, w_root, *, tm=128, tk=128, lane=128):
    """relu(A @ X @ W_rel^T + b_rel + X @ W_root^T) via a tiled Pallas kernel.

    adj    : (N, N) dense adjacency, A[dst, src] = sum of edge weights
    x      : (N, D) node embeddings
    w_rel  : (D, D) lin_rel weight  (PyTorch layout: out x in)
    b_rel  : (D,)   lin_rel bias
    w_root : (D, D) lin_root weight (PyTorch layout: out x in)
    """
    n, d = x.shape
    n_pad = _round_up(n, max(tm, tk))
    assert n_pad % tm == 0 and n_pad % tk == 0
    d_pad = _round_up(d, lane)

    # Zero padding is exact: padded X cols / A rows-cols contribute nothing to
    # valid outputs; padded outputs are sliced off below.
    adj_p = jnp.pad(adj.astype(jnp.float32), ((0, n_pad - n), (0, n_pad - n)))
    x_p = jnp.pad(x.astype(jnp.float32), ((0, n_pad - n), (0, d_pad - d)))

    # bf16 operands for the A @ X aggregation (halves HBM bytes, bf16 MXU rate);
    # the accumulate is f32 inside the kernel.
    adj_bf = adj_p.astype(jnp.bfloat16)
    x_bf = x_p.astype(jnp.bfloat16)

    # Fused weight operand: [W_rel^T ; W_root^T], zero-padded to (2*Dp, Dp).
    w_rel_t = jnp.pad(w_rel.T.astype(jnp.float32), ((0, d_pad - d), (0, d_pad - d)))
    w_root_t = jnp.pad(w_root.T.astype(jnp.float32), ((0, d_pad - d), (0, d_pad - d)))
    w_stack = jnp.concatenate([w_rel_t, w_root_t], axis=0)          # (2*Dp, Dp)
    b_p = jnp.pad(b_rel.astype(jnp.float32), (0, d_pad - d)).reshape(1, d_pad)

    grid = (n_pad // tm, n_pad // tk)

    # NOTE: for large N pick A tiles so 2x double-buffered tiles + X/out/acc fit
    # scoped VMEM (v7x has 64 MiB physical / 32 MiB default scoped); at these
    # 128x128 bf16 tiles the footprint is a few hundred KiB.
    out_p = pl.pallas_call(
        gcn_kernel,
        out_shape=jax.ShapeDtypeStruct((n_pad, d_pad), jnp.float32),
        grid_spec=pltpu.PrefetchScalarGridSpec(
            num_scalar_prefetch=0,
            grid=grid,
            in_specs=[
                pl.BlockSpec((tm, tk), lambda i, k: (i, k)),        # A tile
                pl.BlockSpec((tk, d_pad), lambda i, k: (k, 0)),     # X (reduction rows)
                pl.BlockSpec((tm, d_pad), lambda i, k: (i, 0)),     # X (root rows, resident)
                pl.BlockSpec((2 * d_pad, d_pad), lambda i, k: (0, 0)),  # stacked weights
                pl.BlockSpec((1, d_pad), lambda i, k: (0, 0)),      # bias
            ],
            out_specs=pl.BlockSpec((tm, d_pad), lambda i, k: (i, 0)),
            scratch_shapes=[pltpu.VMEM((tm, d_pad), jnp.float32)],
        ),
        compiler_params=pltpu.CompilerParams(
            dimension_semantics=("parallel", "arbitrary")),
    )(adj_bf, x_bf, x_bf, w_stack, b_p)

    return out_p[:n, :d]


def build_adjacency(edge_index, edge_weight, num_nodes):
    # Plain-JAX glue: scatter-add edge weights into a dense (N, N) matrix,
    # A[dst, src] += w  (source_to_target message-passing flow).
    src = edge_index[0]
    dst = edge_index[1]
    adj = jnp.zeros((num_nodes, num_nodes), dtype=jnp.float32)
    adj = adj.at[dst, src].add(edge_weight)
    return adj


if __name__ == "__main__":
    # Deterministic synthetic graph (stand-in for the CSV-derived graph).
    num_nodes = 256
    embedding_dim = 16
    num_edges = 1024

    key = jax.random.PRNGKey(0)
    k_emb, k_wr, k_br, k_w0, k_src, k_dst, k_w = jax.random.split(key, 7)

    # nn.Embedding(num_nodes, embedding_dim).weight ~ N(0, 1)
    emb_weight = jax.random.normal(k_emb, (num_nodes, embedding_dim), dtype=jnp.float32)

    # GraphConv(embedding_dim, embedding_dim) parameters (deterministic init).
    bound = 1.0 / jnp.sqrt(embedding_dim)
    w_rel = jax.random.uniform(k_wr, (embedding_dim, embedding_dim),
                               minval=-bound, maxval=bound, dtype=jnp.float32)
    b_rel = jax.random.uniform(k_br, (embedding_dim,),
                               minval=-bound, maxval=bound, dtype=jnp.float32)
    w_root = jax.random.uniform(k_w0, (embedding_dim, embedding_dim),
                                minval=-bound, maxval=bound, dtype=jnp.float32)

    # Synthetic edge_index / edge_attr (as data.edge_index / data.edge_attr would supply).
    src = jax.random.randint(k_src, (num_edges,), 0, num_nodes)
    dst = jax.random.randint(k_dst, (num_edges,), 0, num_nodes)
    edge_index = jnp.stack([src, dst], axis=0)                      # (2, num_edges)
    edge_weight = jax.random.uniform(k_w, (num_edges,), dtype=jnp.float32)

    adj = build_adjacency(edge_index, edge_weight, num_nodes)

    out = gcn_forward(adj, emb_weight, w_rel, b_rel, w_root)
    out = jax.block_until_ready(out)
    assert out.shape == (num_nodes, embedding_dim)

    # Reference 1: same math with the same bf16-quantized A/X (validates the kernel).
    hi = jax.lax.Precision.HIGHEST
    a32 = adj.astype(jnp.bfloat16).astype(jnp.float32)
    x32 = emb_weight.astype(jnp.bfloat16).astype(jnp.float32)
    agg = jnp.dot(a32, x32, precision=hi)
    ref = jnp.maximum(jnp.dot(agg, w_rel.T, precision=hi) + b_rel
                      + jnp.dot(x32, w_root.T, precision=hi), 0.0)
    assert jnp.allclose(out, ref, atol=2e-3, rtol=2e-3)

    # Reference 2: loose sanity check against full-f32 GraphConv semantics
    # (bf16 A/X is a deliberate perf choice; accumulation is still f32).
    agg_f = jnp.dot(adj, emb_weight, precision=hi)
    ref_f = jnp.maximum(jnp.dot(agg_f, w_rel.T, precision=hi) + b_rel
                        + jnp.dot(emb_weight, w_root.T, precision=hi), 0.0)
    assert jnp.allclose(out, ref_f, atol=1e-1, rtol=1e-1)

    print("KERNEL_OK")
</pallas_src>

<mosaic_0001>
module attributes {stable_mosaic.version = 11 : i64} {
  func.func @gcn_kernel(%arg0: i32, %arg1: i32, %arg2: memref<128x128xbf16, #tpu.memory_space<vmem>>, %arg3: memref<128x128xbf16, #tpu.memory_space<vmem>>, %arg4: memref<128x128xbf16, #tpu.memory_space<vmem>>, %arg5: memref<256x128xf32, #tpu.memory_space<vmem>>, %arg6: memref<1x128xf32, #tpu.memory_space<vmem>>, %arg7: memref<128x128xf32, #tpu.memory_space<vmem>>, %arg8: memref<128x128xf32, #tpu.memory_space<vmem>>) attributes {dimension_semantics = [#tpu.dimension_semantics<parallel>, #tpu.dimension_semantics<arbitrary>], iteration_bounds = array<i64: 2, 2>, scalar_prefetch = 0 : i64, scratch_operands = 1 : i64, tpu.core_type = #tpu.core_type<tc>, window_params = [{transform_indices = @transform_0, window_bounds = array<i64: 128, 128>}, {transform_indices = @transform_1, window_bounds = array<i64: 128, 128>}, {transform_indices = @transform_2, window_bounds = array<i64: 128, 128>}, {pipeline_mode = #tpu.pipeline_mode<synchronous>, transform_indices = @transform_3, window_bounds = array<i64: 256, 128>}, {pipeline_mode = #tpu.pipeline_mode<synchronous>, transform_indices = @transform_4, window_bounds = array<i64: 1, 128>}, {transform_indices = @transform_5, window_bounds = array<i64: 128, 128>}]} {
    %c0_i32 = arith.constant 0 : i32
    %0 = arith.cmpi eq, %arg1, %c0_i32 : i32
    %1 = arith.extui %0 : i1 to i32
    %c0_i32_0 = arith.constant 0 : i32
    %2 = arith.cmpi ne, %1, %c0_i32_0 : i32
    scf.if %2 {
      %cst_9 = arith.constant 0.000000e+00 : f32
      %12 = vector.broadcast %cst_9 : f32 to vector<128x128xf32>
      %c0_10 = arith.constant 0 : index
      %c0_11 = arith.constant 0 : index
      %13 = vector.load %arg8[%c0_10, %c0_11] : memref<128x128xf32, #tpu.memory_space<vmem>>, vector<128x128xf32>
      tpu.vector_store %arg8[%c0_10, %c0_11], %12 {strides = array<i32>} : memref<128x128xf32, #tpu.memory_space<vmem>>, vector<128x128xf32>,
    } else {
    }
    %c0 = arith.constant 0 : index
    %c0_1 = arith.constant 0 : index
    %3 = vector.load %arg8[%c0, %c0_1] : memref<128x128xf32, #tpu.memory_space<vmem>>, vector<128x128xf32>
    %c0_2 = arith.constant 0 : index
    %c0_3 = arith.constant 0 : index
    %4 = vector.load %arg2[%c0_2, %c0_3] : memref<128x128xbf16, #tpu.memory_space<vmem>>, vector<128x128xbf16>
    %c0_4 = arith.constant 0 : index
    %c0_5 = arith.constant 0 : index
    %5 = vector.load %arg3[%c0_4, %c0_5] : memref<128x128xbf16, #tpu.memory_space<vmem>>, vector<128x128xbf16>
    %cst = arith.constant dense<0.000000e+00> : vector<128x128xf32>
    %6 = tpu.matmul %4, %5, %cst {dimension_numbers = #tpu.dot_dimension_numbers<[1], [0], [0], [1], [0, 0, 1, 1], [], []>} : vector<128x128xbf16>, vector<128x128xbf16>, vector<128x128xf32> -> vector<128x128xf32>
    %7 = arith.addf %3, %6 : vector<128x128xf32>
    %c0_6 = arith.constant 0 : index
    %c0_7 = arith.constant 0 : index
    %8 = vector.load %arg8[%c0_6, %c0_7] : memref<128x128xf32, #tpu.memory_space<vmem>>, vector<128x128xf32>
    tpu.vector_store %arg8[%c0_6, %c0_7], %7 {strides = array<i32>} : memref<128x128xf32, #tpu.memory_space<vmem>>, vector<128x128xf32>,
    %c1_i32 = arith.constant 1 : i32
    %9 = arith.cmpi eq, %arg1, %c1_i32 : i32
    %10 = arith.extui %9 : i1 to i32
    %c0_i32_8 = arith.constant 0 : i32
    %11 = arith.cmpi ne, %10, %c0_i32_8 : i32
    scf.if %11 {
      %c0_9 = arith.constant 0 : index
      %c0_10 = arith.constant 0 : index
      %12 = vector.load %arg8[%c0_9, %c0_10] : memref<128x128xf32, #tpu.memory_space<vmem>>, vector<128x128xf32>
      %c0_11 = arith.constant 0 : index
      %c0_12 = arith.constant 0 : index
      %13 = vector.load %arg4[%c0_11, %c0_12] : memref<128x128xbf16, #tpu.memory_space<vmem>>, vector<128x128xbf16>
      %14 = arith.extf %13 : vector<128x128xbf16> to vector<128x128xf32>
      %15 = tpu.concatenate %12, %14 in 1 : vector<128x128xf32>, vector<128x128xf32> -> vector<128x256xf32>
      %c0_13 = arith.constant 0 : index
      %c0_14 = arith.constant 0 : index
      %16 = vector.load %arg5[%c0_13, %c0_14] : memref<256x128xf32, #tpu.memory_space<vmem>>, vector<256x128xf32>
      %cst_15 = arith.constant dense<0.000000e+00> : vector<128x128xf32>
      %17 = tpu.matmul %15, %16, %cst_15 {dimension_numbers = #tpu.dot_dimension_numbers<[1], [0], [0], [1], [0, 0, 1, 1], [], []>} : vector<128x256xf32>, vector<256x128xf32>, vector<128x128xf32> -> vector<128x128xf32>
      %c0_16 = arith.constant 0 : index
      %c0_17 = arith.constant 0 : index
      %18 = vector.load %arg6[%c0_16, %c0_17] : memref<1x128xf32, #tpu.memory_space<vmem>>, vector<1x128xf32>
      %19 = vector.broadcast %18 : vector<1x128xf32> to vector<128x128xf32>
      %20 = arith.addf %17, %19 : vector<128x128xf32>
      %cst_18 = arith.constant 0.000000e+00 : f32
      %21 = vector.broadcast %cst_18 : f32 to vector<128x128xf32>
      %22 = arith.maximumf %20, %21 : vector<128x128xf32>
      %c0_19 = arith.constant 0 : index
      %c0_20 = arith.constant 0 : index
      %23 = vector.load %arg7[%c0_19, %c0_20] : memref<128x128xf32, #tpu.memory_space<vmem>>, vector<128x128xf32>
      tpu.vector_store %arg7[%c0_19, %c0_20], %22 {strides = array<i32>} : memref<128x128xf32, #tpu.memory_space<vmem>>, vector<128x128xf32>,
    } else {
    }
    return
  }
  func.func @transform_0(%arg0: i32, %arg1: i32) -> (i32, i32) {
    %c0_i32 = arith.constant 0 : i32
    return %arg0, %arg1 : i32, i32
  }
  func.func @transform_1(%arg0: i32, %arg1: i32) -> (i32, i32) {
    %c0_i32 = arith.constant 0 : i32
    %c0_i32_0 = arith.constant 0 : i32
    return %arg1, %c0_i32 : i32, i32
  }
  func.func @transform_2(%arg0: i32, %arg1: i32) -> (i32, i32) {
    %c0_i32 = arith.constant 0 : i32
    %c0_i32_0 = arith.constant 0 : i32
    return %arg0, %c0_i32 : i32, i32
  }
  func.func @transform_3(%arg0: i32, %arg1: i32) -> (i32, i32) {
    %c0_i32 = arith.constant 0 : i32
    %c0_i32_0 = arith.constant 0 : i32
    %c0_i32_1 = arith.constant 0 : i32
    return %c0_i32, %c0_i32_0 : i32, i32
  }
  func.func @transform_4(%arg0: i32, %arg1: i32) -> (i32, i32) {
    %c0_i32 = arith.constant 0 : i32
    %c0_i32_0 = arith.constant 0 : i32
    %c0_i32_1 = arith.constant 0 : i32
    return %c0_i32, %c0_i32_0 : i32, i32
  }
  func.func @transform_5(%arg0: i32, %arg1: i32) -> (i32, i32) {
    %c0_i32 = arith.constant 0 : i32
    %c0_i32_0 = arith.constant 0 : i32
    return %arg0, %c0_i32 : i32, i32
  }
}

</mosaic_0001>

<llo_original>
// kernel: tpu_custom_call.1
$region0: #{tpu_custom_call.1}
  #allocation0 [shape = 'u32[]', space=smem, size = 0x4, offset = 0x4, fixed_abs, tag = 'smem constant byte address 0x4 - core index']
  #allocation1 [shape = 'u32[144,128]{1,0:T(1,128)}', space=vmem, size = 0x12000, scoped, tag = 'internal scratch']
  #allocation2 [shape = 'f32[128,128]{1,0:T(8,128)}', space=vmem, size = 0x10000, scoped, tag = 'scratch operand']
  %s0 = inlined_call_operand.hbm [shape: bf16[256,256], index: 0, kind: input, shape index: {}]
  %s1 = inlined_call_operand.hbm [shape: bf16[256,128], index: 1, kind: input, shape index: {}]
  %s2 = inlined_call_operand.hbm [shape: bf16[256,128], index: 2, kind: input, shape index: {}]
  %s3 = inlined_call_operand.hbm [shape: f32[256,128], index: 3, kind: input, shape index: {}]
  %s4 = inlined_call_operand.vmem [shape: f32[1,128], index: 4, kind: input, shape index: {}]
  %s5 = inlined_call_operand.hbm [shape: f32[256,128], index: 5, kind: output, shape index: {}]
  %s6 = sld [smem:[#allocation0]]
  $region77: #{tpu_custom_call.1} parent=0
    _
  %s8 = ssub.s32 1, %s6
  %s9 = scalar_select 0, %s8, %s6
  $region1: #{tpu_custom_call.1} parent=0
    #allocation3 [shape = 'u8[65536]{0}', space=vmem, size = 0x10000, scoped, tag = 'input window, operand 0']
    #allocation4 [shape = 's32[2]{0}', space=sflag, size = 0x8, scoped, tag = 'scoped memory for tpu_custom_call.1']
    #allocation5 [shape = 's32[2]{0}', space=sflag, size = 0x8, scoped, tag = 'scoped memory for tpu_custom_call.1']
    #allocation6 [shape = 'u8[65536]{0}', space=vmem, size = 0x10000, scoped, tag = 'input window, operand 1']
    #allocation7 [shape = 's32[2]{0}', space=sflag, size = 0x8, scoped, tag = 'scoped memory for tpu_custom_call.1']
    #allocation8 [shape = 'u8[65536]{0}', space=vmem, size = 0x10000, scoped, tag = 'input window, operand 2']
    #allocation9 [shape = 'u8[131072]{0}', space=vmem, size = 0x20000, scoped, tag = 'input window, operand 3, single buffered']
    #allocation10 [shape = 's32[1]{0}', space=sflag, size = 0x4, scoped, tag = 'scoped memory for tpu_custom_call.1']
    #allocation11 [shape = 'u8[131072]{0}', space=vmem, size = 0x20000, scoped, tag = 'output window, operand 0']
    %10 = vsyncpa [#allocation4], 0
    %s11 = scalar_lea.sflag [#allocation4], 1
    %12 = vsyncpa %s11, 0
    %13 = vsyncpa [#allocation7], 0
    %s14 = scalar_lea.sflag [#allocation7], 1
    %15 = vsyncpa %s14, 0
    %16 = vsyncpa [#allocation10], 0
    %17 = vsyncpa [#allocation5], 0
    %s18 = scalar_lea.sflag [#allocation5], 1
    %19 = vsyncpa %s18, 0
    loop: start=0, step=1, limit=6
    $region2: #{tpu_custom_call.1} parent=1 // loop_pre_header
      _
    $region3: #{tpu_custom_call.1} parent=1 // loop_header
      %s21 = sphi 0, %s25
      %p22 = scmp.ge.s32.totalorder %s21, 6
      %s28 = sphi 0, %s40
      %s29 = sphi 0, %s36
      %s30 = sphi 0, %s28
      %s31 = sphi 0, %s29
      %s32 = sphi 0, %s30
      %s33 = sphi 0, %s31
      %s45 = sphi 0, %s47
      %s48 = sphi 0, %s45
      %s49 = sphi 0, %s48
      %s65 = sphi 0, %s49
      %s71 = sphi 0, %s73
      %s74 = sphi 0, %s71
      %s75 = sphi 0, %s74
      %s91 = sphi 0, %s75
      %s97 = sphi 0, %s99
      %s100 = sphi 0, %s97
      %s101 = sphi 0, %s100
      %s117 = sphi 0, %s101
      %s121 = sphi 0, %s121
      %s123 = sphi 0, %s121
      %s124 = sphi 0, %s123
      %s138 = sphi 0, %s124
      %s142 = sphi 0, %s142
      %s144 = sphi 0, %s142
      %s145 = sphi 0, %s144
      %s159 = sphi 0, %s145
      %s165 = sphi 0, %s167
      %s168 = sphi 0, %s165
      %s169 = sphi 0, %s168
      %s185 = sphi 0, %s169
    $region4: #{tpu_custom_call.1} parent=1 // loop_header_branch
      %24 = sbr.rel (%p22) target = $region8
    $region5: #{tpu_custom_call.1} parent=1 // loop_body
      %s26 = ssub.s32 %s21, 1
      %s27 = ssub.s32 %s21, 2
      %s34 = sadd.s32 1, %s29
      %p35 = scmp.ge.s32.totalorder %s34, 2
      %s36 = scalar_select %p35, 0, %s34
      %s37 = sadd.s32 1, %s28
      %s38 = scalar_select %p35, %s37, %s28
      %p39 = scmp.ge.s32.totalorder %s38, 2
      %s40 = scalar_select %p39, 0, %s38
      %s41 = ssub.s32 %s28, %s40
      %s42 = ssub.s32 %s29, %s36
      %s43 = sor.u32 %s41, %s42
      %p44 = scmp.eq.s32.totalorder %s43, 0
      %s46 = sadd.s32 %s45, 1
      %s47 = scalar_select %p44, %s45, %s46
      %p50 = pneg %p44
      %p51 = scmp.eq.s32.totalorder %s21, 3
      %p52 = por %p50, %p51
      %p53 = scmp.ne.s32.totalorder %s45, %s48
      %p54 = scmp.eq.s32.totalorder %s21, 0
      %p55 = por %p53, %p54
      %p56 = scmp.ne.s32.totalorder %s45, %s48
      %p57 = scmp.eq.s32.totalorder %s26, 3
      %p58 = por %p56, %p57
      %p59 = scmp.ne.s32.totalorder %s48, %s49
      %p60 = scmp.eq.s32.totalorder %s26, 0
      %p61 = por %p59, %p60
      %p62 = scmp.ne.s32.totalorder %s48, %s49
      %p63 = scmp.eq.s32.totalorder %s27, 3
      %p64 = por %p62, %p63
      %p66 = scmp.ne.s32.totalorder %s49, %s65
      %p67 = scmp.eq.s32.totalorder %s27, 0
      %p68 = por %p66, %p67
      %s69 = ssub.s32 %s29, %s36
      %p70 = scmp.eq.s32.totalorder %s69, 0
      %s72 = sadd.s32 %s71, 1
      %s73 = scalar_select %p70, %s71, %s72
      %p76 = pneg %p70
      %p77 = scmp.eq.s32.totalorder %s21, 3
      %p78 = por %p76, %p77
      %p79 = scmp.ne.s32.totalorder %s71, %s74
      %p80 = scmp.eq.s32.totalorder %s21, 0
      %p81 = por %p79, %p80
      %p82 = scmp.ne.s32.totalorder %s71, %s74
      %p83 = scmp.eq.s32.totalorder %s26, 3
      %p84 = por %p82, %p83
      %p85 = scmp.ne.s32.totalorder %s74, %s75
      %p86 = scmp.eq.s32.totalorder %s26, 0
      %p87 = por %p85, %p86
      %p88 = scmp.ne.s32.totalorder %s74, %s75
      %p89 = scmp.eq.s32.totalorder %s27, 3
      %p90 = por %p88, %p89
      %p92 = scmp.ne.s32.totalorder %s75, %s91
      %p93 = scmp.eq.s32.totalorder %s27, 0
      %p94 = por %p92, %p93
      %s95 = ssub.s32 %s28, %s40
      %p96 = scmp.eq.s32.totalorder %s95, 0
      %s98 = sadd.s32 %s97, 1
      %s99 = scalar_select %p96, %s97, %s98
      %p102 = pneg %p96
      %p103 = scmp.eq.s32.totalorder %s21, 3
      %p104 = por %p102, %p103
      %p105 = scmp.ne.s32.totalorder %s97, %s100
      %p106 = scmp.eq.s32.totalorder %s21, 0
      %p107 = por %p105, %p106
      %p108 = scmp.ne.s32.totalorder %s97, %s100
      %p109 = scmp.eq.s32.totalorder %s26, 3
      %p110 = por %p108, %p109
      %p111 = scmp.ne.s32.totalorder %s100, %s101
      %p112 = scmp.eq.s32.totalorder %s26, 0
      %p113 = por %p111, %p112
      %p114 = scmp.ne.s32.totalorder %s100, %s101
      %p115 = scmp.eq.s32.totalorder %s27, 3
      %p116 = por %p114, %p115
      %p118 = scmp.ne.s32.totalorder %s101, %s117
      %p119 = scmp.eq.s32.totalorder %s27, 0
      %p120 = por %p118, %p119
      %s122 = sadd.s32 %s121, 1
      %p125 = scmp.eq.s32.totalorder %s21, 3
      %p126 = scmp.ne.s32.totalorder %s121, %s123
      %p127 = scmp.eq.s32.totalorder %s21, 0
      %p128 = por %p126, %p127
      %p129 = scmp.ne.s32.totalorder %s121, %s123
      %p130 = scmp.eq.s32.totalorder %s26, 3
      %p131 = por %p129, %p130
      %p132 = scmp.ne.s32.totalorder %s123, %s124
      %p133 = scmp.eq.s32.totalorder %s26, 0
      %p134 = por %p132, %p133
      %p135 = scmp.ne.s32.totalorder %s123, %s124
      %p136 = scmp.eq.s32.totalorder %s27, 3
      %p137 = por %p135, %p136
      %p139 = scmp.ne.s32.totalorder %s124, %s138
      %p140 = scmp.eq.s32.totalorder %s27, 0
      %p141 = por %p139, %p140
      %s143 = sadd.s32 %s142, 1
      %p146 = scmp.eq.s32.totalorder %s21, 3
      %p147 = scmp.ne.s32.totalorder %s142, %s144
      %p148 = scmp.eq.s32.totalorder %s21, 0
      %p149 = por %p147, %p148
      %p150 = scmp.ne.s32.totalorder %s142, %s144
      %p151 = scmp.eq.s32.totalorder %s26, 3
      %p152 = por %p150, %p151
      %p153 = scmp.ne.s32.totalorder %s144, %s145
      %p154 = scmp.eq.s32.totalorder %s26, 0
      %p155 = por %p153, %p154
      %p156 = scmp.ne.s32.totalorder %s144, %s145
      %p157 = scmp.eq.s32.totalorder %s27, 3
      %p158 = por %p156, %p157
      %p160 = scmp.ne.s32.totalorder %s145, %s159
      %p161 = scmp.eq.s32.totalorder %s27, 0
      %p162 = por %p160, %p161
      %s163 = ssub.s32 %s28, %s40
      %p164 = scmp.eq.s32.totalorder %s163, 0
      %s166 = sadd.s32 %s165, 1
      %s167 = scalar_select %p164, %s165, %s166
      %p170 = pneg %p164
      %p171 = scmp.eq.s32.totalorder %s21, 3
      %p172 = por %p170, %p171
      %p173 = scmp.ne.s32.totalorder %s165, %s168
      %p174 = scmp.eq.s32.totalorder %s21, 0
      %p175 = por %p173, %p174
      %p176 = scmp.ne.s32.totalorder %s165, %s168
      %p177 = scmp.eq.s32.totalorder %s26, 3
      %p178 = por %p176, %p177
      %p179 = scmp.ne.s32.totalorder %s168, %s169
      %p180 = scmp.eq.s32.totalorder %s26, 0
      %p181 = por %p179, %p180
      %p182 = scmp.ne.s32.totalorder %s168, %s169
      %p183 = scmp.eq.s32.totalorder %s27, 3
      %p184 = por %p182, %p183
      %p186 = scmp.ne.s32.totalorder %s169, %s185
      %p187 = scmp.eq.s32.totalorder %s27, 0
      %p188 = por %p186, %p187
      %p189 = scmp.le.s32.totalorder 1, %s21
      %p190 = scmp.lt.s32.totalorder %s21, 5
      %p191 = pnand %p189, %p190
      %p192 = pneg %p191
      // Predicated region
      $region9: #{tpu_custom_call.1} parent=5 // pred_check
        _
      $region10: #{tpu_custom_call.1} parent=5 // pred_check_branch
        %194 = sbr.rel (%p191) target = $region12
      $region11: #{tpu_custom_call.1} parent=5 // pred_region
        %s195 = ssub.s32 %s21, 1
        // Predicated region
        $region13: #{tpu_custom_call.1} parent=11 // pred_check
          %p196 = pneg %p134
        $region14: #{tpu_custom_call.1} parent=11 // pred_check_branch
          %198 = sbr.rel (%p196) target = $region16
        $region15: #{tpu_custom_call.1} parent=11 // pred_region
          %s200 = ssub.s32 4096, 4096
          %201 = vsyncadd [#allocation10], %s200
          %s202 = sshll.u32 [#allocation9], 4
          %s203 = int_to_ptr.vmem [resolvable:$true] %s202
          %208 = dma.hbm_to_vmem [thread:$0]  %s3, 4096, %s203, [#allocation10], 128, 128, 8
        $region16: #{tpu_custom_call.1} parent=11 // pred_fallthru
          _
        // Predicated region
        $region17: #{tpu_custom_call.1} parent=11 // pred_check
          %p209 = pneg %p155
        $region18: #{tpu_custom_call.1} parent=11 // pred_check_branch
          %211 = sbr.rel (%p209) target = $region20
        $region19: #{tpu_custom_call.1} parent=11 // pred_region
          _
        $region20: #{tpu_custom_call.1} parent=11 // pred_fallthru
          _
      $region12: #{tpu_custom_call.1} parent=5 // pred_fallthru
        _
      %p212 = scmp.lt.s32.totalorder %s21, 4
      // Predicated region
      $region21: #{tpu_custom_call.1} parent=5 // pred_check
        %p213 = pneg %p212
      $region22: #{tpu_custom_call.1} parent=5 // pred_check_branch
        %215 = sbr.rel (%p213) target = $region24
      $region23: #{tpu_custom_call.1} parent=5 // pred_region
        // Predicated region
        $region25: #{tpu_custom_call.1} parent=23 // pred_check
          %p216 = pneg %p55
        $region26: #{tpu_custom_call.1} parent=23 // pred_check_branch
          %218 = sbr.rel (%p216) target = $region28
        $region27: #{tpu_custom_call.1} parent=23 // pred_region
          %s219 = sand.u32 %s45, 1
          %s220 = scalar_lea.sflag [#allocation4], %s219
          %s221 = sand.u32 %s45, 1
          %s222 = smul.addr %s221, 64
          %s223 = scalar_lea.vmem [#allocation3], %s222
          %s224 = smul.u32 16, %s28
          %s226 = ssub.s32 1024, 1024
          %227 = vsyncadd %s220, %s226
          %s228 = smul.addr %s224, 2
          %s229 = sadd.s32 %s29, %s228
          %s230 = smul.addr %s229, 64
          %s231 = scalar_lea.hbm %s0, %s230
          %s232 = sshll.u32 %s223, 4
          %s233 = int_to_ptr.vmem [resolvable:$true] %s232
          %238 = dma.hbm_to_vmem [thread:$0]  %s231, 1024, %s233, %s220, 128, 64, 4
        $region28: #{tpu_custom_call.1} parent=23 // pred_fallthru
          _
        // Predicated region
        $region29: #{tpu_custom_call.1} parent=23 // pred_check
          %p239 = pneg %p81
        $region30: #{tpu_custom_call.1} parent=23 // pred_check_branch
          %241 = sbr.rel (%p239) target = $region32
        $region31: #{tpu_custom_call.1} parent=23 // pred_region
          %s242 = sand.u32 %s21, 1
          %s243 = scalar_lea.sflag [#allocation7], %s242
          %s244 = sand.u32 %s71, 1
          %s245 = smul.addr %s244, 64
          %s246 = scalar_lea.vmem [#allocation6], %s245
          %s247 = smul.u32 16, %s29
          %s249 = ssub.s32 1024, 1024
          %250 = vsyncadd %s243, %s249
          %s251 = smul.addr %s247, 64
          %s252 = scalar_lea.hbm %s1, %s251
          %s253 = sshll.u32 %s246, 4
          %s254 = int_to_ptr.vmem [resolvable:$true] %s253
          %259 = dma.hbm_to_vmem [thread:$0]  %s252, 1024, %s254, %s243, 64, 64, 4
        $region32: #{tpu_custom_call.1} parent=23 // pred_fallthru
          _
        // Predicated region
        $region33: #{tpu_custom_call.1} parent=23 // pred_check
          %p260 = pneg %p107
        $region34: #{tpu_custom_call.1} parent=23 // pred_check_branch
          %262 = sbr.rel (%p260) target = $region36
        $region35: #{tpu_custom_call.1} parent=23 // pred_region
          %s263 = sand.u32 %s21, 1
          %s264 = scalar_lea.sflag [#allocation7], %s263
          %s265 = sand.u32 %s97, 1
          %s266 = smul.addr %s265, 64
          %s267 = scalar_lea.vmem [#allocation8], %s266
          %s268 = smul.u32 16, %s28
          %s270 = ssub.s32 1024, 1024
          %271 = vsyncadd %s264, %s270
          %s272 = smul.addr %s268, 64
          %s273 = scalar_lea.hbm %s2, %s272
          %s274 = sshll.u32 %s267, 4
          %s275 = int_to_ptr.vmem [resolvable:$true] %s274
          %280 = dma.hbm_to_vmem [thread:$0]  %s273, 1024, %s275, %s264, 64, 64, 4
        $region36: #{tpu_custom_call.1} parent=23 // pred_fallthru
          _
      $region24: #{tpu_custom_call.1} parent=5 // pred_fallthru
        _
      %p281 = scmp.le.s32.totalorder 1, %s21
      %p282 = scmp.lt.s32.totalorder %s21, 5
      %p283 = pnand %p281, %p282
      %p284 = pneg %p283
      // Predicated region
      $region37: #{tpu_custom_call.1} parent=5 // pred_check
        _
      $region38: #{tpu_custom_call.1} parent=5 // pred_check_branch
        %286 = sbr.rel (%p283) target = $region40
      $region39: #{tpu_custom_call.1} parent=5 // pred_region
        %s287 = ssub.s32 %s21, 1
        %s288 = sand.u32 %s48, 1
        %s289 = scalar_lea.sflag [#allocation4], %s288
        %s290 = sand.u32 %s48, 1
        %s291 = smul.addr %s290, 64
        %s292 = scalar_lea.vmem [#allocation3], %s291
        // Predicated region
        $region41: #{tpu_custom_call.1} parent=39 // pred_check
          %p293 = pneg %p61
        $region42: #{tpu_custom_call.1} parent=39 // pred_check_branch
          %295 = sbr.rel (%p293) target = $region44
        $region43: #{tpu_custom_call.1} parent=39 // pred_region
          %296 = dma.done %s289, 1024
        $region44: #{tpu_custom_call.1} parent=39 // pred_fallthru
          _
        %s297 = sand.u32 %s26, 1
        %s298 = scalar_lea.sflag [#allocation7], %s297
        %s299 = sand.u32 %s74, 1
        %s300 = smul.addr %s299, 64
        %s301 = scalar_lea.vmem [#allocation6], %s300
        // Predicated region
        $region45: #{tpu_custom_call.1} parent=39 // pred_check
          %p302 = pneg %p87
        $region46: #{tpu_custom_call.1} parent=39 // pred_check_branch
          %304 = sbr.rel (%p302) target = $region48
        $region47: #{tpu_custom_call.1} parent=39 // pred_region
          %305 = dma.done %s298, 1024
        $region48: #{tpu_custom_call.1} parent=39 // pred_fallthru
          _
        %s306 = sand.u32 %s26, 1
        %s307 = scalar_lea.sflag [#allocation7], %s306
        %s308 = sand.u32 %s100, 1
        %s309 = smul.addr %s308, 64
        %s310 = scalar_lea.vmem [#allocation8], %s309
        // Predicated region
        $region49: #{tpu_custom_call.1} parent=39 // pred_check
          %p311 = pneg %p113
        $region50: #{tpu_custom_call.1} parent=39 // pred_check_branch
          %313 = sbr.rel (%p311) target = $region52
        $region51: #{tpu_custom_call.1} parent=39 // pred_region
          %314 = dma.done %s307, 1024
        $region52: #{tpu_custom_call.1} parent=39 // pred_fallthru
          _
        // Predicated region
        $region53: #{tpu_custom_call.1} parent=39 // pred_check
          %p315 = pneg %p134
        $region54: #{tpu_custom_call.1} parent=39 // pred_check_branch
          %317 = sbr.rel (%p315) target = $region56
        $region55: #{tpu_custom_call.1} parent=39 // pred_region
          %318 = dma.done [#allocation10], 4096
        $region56: #{tpu_custom_call.1} parent=39 // pred_fallthru
          _
        %s319 = sand.u32 %s48, 1
        %s320 = scalar_lea.sflag [#allocation4], %s319
        %s321 = sand.u32 %s48, 1
        %s322 = smul.addr %s321, 64
        %s323 = scalar_lea.vmem [#allocation3], %s322
        %p324 = pneg %p61
        %p325 = pneg %p58
        %s326 = sand.u32 %s26, 1
        %s327 = scalar_lea.sflag [#allocation7], %s326
        %s328 = sand.u32 %s74, 1
        %s329 = smul.addr %s328, 64
        %s330 = scalar_lea.vmem [#allocation6], %s329
        %p331 = pneg %p87
        %p332 = pneg %p84
        %s333 = sand.u32 %s26, 1
        %s334 = scalar_lea.sflag [#allocation7], %s333
        %s335 = sand.u32 %s100, 1
        %s336 = smul.addr %s335, 64
        %s337 = scalar_lea.vmem [#allocation8], %s336
        %p338 = pneg %p113
        %p339 = pneg %p110
        %p340 = pneg %p134
        %p341 = pneg %p131
        %p342 = pneg %p155
        %p343 = pneg %p152
        %p344 = pneg %p181
        %p345 = pneg %p178
        %s346 = sand.u32 %s168, 1
        %s347 = scalar_lea.sflag [#allocation5], %s346
        %s348 = sand.u32 %s168, 1
        %s349 = smul.addr %s348, 128
        %s350 = scalar_lea.vmem [#allocation11], %s349
        %s351 = smul.u32 16, %s30
        %s352 = smul.u32 16, %s31
        %s353 = smul.u32 16, %s30
        %s354 = smul.u32 16, %s30
        %p356 = scmp.eq.s32.totalorder %s31, 0
        // Predicated region
        $region57: #{tpu_custom_call.1} parent=39 // pred_check
          %p357 = pneg %p356
        $region58: #{tpu_custom_call.1} parent=39 // pred_check_branch
          %359 = sbr.rel (%p357) target = $region60
        $region59: #{tpu_custom_call.1} parent=39 // pred_region
          %360 = vst [vmem:[#allocation2] sm:$0xff] 0.0
          %361 = vst [vmem:[#allocation2 + $0x8] sm:$0xff] 0.0
          %362 = vst [vmem:[#allocation2 + $0x10] sm:$0xff] 0.0
          %363 = vst [vmem:[#allocation2 + $0x18] sm:$0xff] 0.0
          %364 = vst [vmem:[#allocation2 + $0x20] sm:$0xff] 0.0
          %365 = vst [vmem:[#allocation2 + $0x28] sm:$0xff] 0.0
          %366 = vst [vmem:[#allocation2 + $0x30] sm:$0xff] 0.0
          %367 = vst [vmem:[#allocation2 + $0x38] sm:$0xff] 0.0
          %368 = vst [vmem:[#allocation2 + $0x40] sm:$0xff] 0.0
          %369 = vst [vmem:[#allocation2 + $0x48] sm:$0xff] 0.0
          %370 = vst [vmem:[#allocation2 + $0x50] sm:$0xff] 0.0
          %371 = vst [vmem:[#allocation2 + $0x58] sm:$0xff] 0.0
          %372 = vst [vmem:[#allocation2 + $0x60] sm:$0xff] 0.0
          %373 = vst [vmem:[#allocation2 + $0x68] sm:$0xff] 0.0
          %374 = vst [vmem:[#allocation2 + $0x70] sm:$0xff] 0.0
          %375 = vst [vmem:[#allocation2 + $0x78] sm:$0xff] 0.0
        $region60: #{tpu_custom_call.1} parent=39 // pred_fallthru
          _
        %v376 = vld [vmem:[#allocation2] sm:$0xff]
        %v377 = vld [vmem:[#allocation2 + $0x8] sm:$0xff]
        %v378 = vld [vmem:[#allocation2 + $0x10] sm:$0xff]
        %v379 = vld [vmem:[#allocation2 + $0x18] sm:$0xff]
        %v380 = vld [vmem:[#allocation2 + $0x20] sm:$0xff]
        %v381 = vld [vmem:[#allocation2 + $0x28] sm:$0xff]
        %v382 = vld [vmem:[#allocation2 + $0x30] sm:$0xff]
        %v383 = vld [vmem:[#allocation2 + $0x38] sm:$0xff]
        %v384 = vld [vmem:[#allocation2 + $0x40] sm:$0xff]
        %v385 = vld [vmem:[#allocation2 + $0x48] sm:$0xff]
        %v386 = vld [vmem:[#allocation2 + $0x50] sm:$0xff]
        %v387 = vld [vmem:[#allocation2 + $0x58] sm:$0xff]
        %v388 = vld [vmem:[#allocation2 + $0x60] sm:$0xff]
        %v389 = vld [vmem:[#allocation2 + $0x68] sm:$0xff]
        %v390 = vld [vmem:[#allocation2 + $0x70] sm:$0xff]
        %v391 = vld [vmem:[#allocation2 + $0x78] sm:$0xff]
        %v392 = vld [vmem:[%s292] sm:$0xf]
        %v393 = vld [vmem:[%s292 + $0x4] sm:$0xf]
        %v394 = vld [vmem:[%s292 + $0x8] sm:$0xf]
        %v395 = vld [vmem:[%s292 + $0xc] sm:$0xf]
        %v396 = vld [vmem:[%s292 + $0x10] sm:$0xf]
        %v397 = vld [vmem:[%s292 + $0x14] sm:$0xf]
        %v398 = vld [vmem:[%s292 + $0x18] sm:$0xf]
        %v399 = vld [vmem:[%s292 + $0x1c] sm:$0xf]
        %v400 = vld [vmem:[%s292 + $0x20] sm:$0xf]
        %v401 = vld [vmem:[%s292 + $0x24] sm:$0xf]
        %v402 = vld [vmem:[%s292 + $0x28] sm:$0xf]
        %v403 = vld [vmem:[%s292 + $0x2c] sm:$0xf]
        %v404 = vld [vmem:[%s292 + $0x30] sm:$0xf]
        %v405 = vld [vmem:[%s292 + $0x34] sm:$0xf]
        %v406 = vld [vmem:[%s292 + $0x38] sm:$0xf]
        %v407 = vld [vmem:[%s292 + $0x3c] sm:$0xf]
        %v408 = vld [vmem:[%s301] sm:$0xf]
        %v409 = vld [vmem:[%s301 + $0x4] sm:$0xf]
        %v410 = vld [vmem:[%s301 + $0x8] sm:$0xf]
        %v411 = vld [vmem:[%s301 + $0xc] sm:$0xf]
        %v412 = vld [vmem:[%s301 + $0x10] sm:$0xf]
        %v413 = vld [vmem:[%s301 + $0x14] sm:$0xf]
        %v414 = vld [vmem:[%s301 + $0x18] sm:$0xf]
        %v415 = vld [vmem:[%s301 + $0x1c] sm:$0xf]
        %v416 = vld [vmem:[%s301 + $0x20] sm:$0xf]
        %v417 = vld [vmem:[%s301 + $0x24] sm:$0xf]
        %v418 = vld [vmem:[%s301 + $0x28] sm:$0xf]
        %v419 = vld [vmem:[%s301 + $0x2c] sm:$0xf]
        %v420 = vld [vmem:[%s301 + $0x30] sm:$0xf]
        %v421 = vld [vmem:[%s301 + $0x34] sm:$0xf]
        %v422 = vld [vmem:[%s301 + $0x38] sm:$0xf]
        %v423 = vld [vmem:[%s301 + $0x3c] sm:$0xf]
        %v440 = vunpack.c.l.b16 %v392
        %v441 = vunpack.c.l.b16 %v393
        %v442 = vunpack.c.l.b16 %v394
        %v443 = vunpack.c.l.b16 %v395
        %v444 = vunpack.c.l.b16 %v396
        %v445 = vunpack.c.l.b16 %v397
        %v446 = vunpack.c.l.b16 %v398
        %v447 = vunpack.c.l.b16 %v399
        %v448 = vunpack.c.l.b16 %v400
        %v449 = vunpack.c.l.b16 %v401
        %v450 = vunpack.c.l.b16 %v402
        %v451 = vunpack.c.l.b16 %v403
        %v452 = vunpack.c.l.b16 %v404
        %v453 = vunpack.c.l.b16 %v405
        %v454 = vunpack.c.l.b16 %v406
        %v455 = vunpack.c.l.b16 %v407
        %v456 = vpack.c.b16 %v441, %v440
        %v457 = vpack.c.b16 %v443, %v442
        %v458 = vpack.c.b16 %v445, %v444
        %v459 = vpack.c.b16 %v447, %v446
        %v460 = vpack.c.b16 %v449, %v448
        %v461 = vpack.c.b16 %v451, %v450
        %v462 = vpack.c.b16 %v453, %v452
        %v463 = vpack.c.b16 %v455, %v454
        %v488 = vunpack.c.l.b16 %v408
        %v489 = vunpack.c.l.b16 %v409
        %v490 = vunpack.c.l.b16 %v410
        %v491 = vunpack.c.l.b16 %v411
        %v492 = vunpack.c.l.b16 %v412
        %v493 = vunpack.c.l.b16 %v413
        %v494 = vunpack.c.l.b16 %v414
        %v495 = vunpack.c.l.b16 %v415
        %v496 = vunpack.c.l.b16 %v416
        %v497 = vunpack.c.l.b16 %v417
        %v498 = vunpack.c.l.b16 %v418
        %v499 = vunpack.c.l.b16 %v419
        %v500 = vunpack.c.l.b16 %v420
        %v501 = vunpack.c.l.b16 %v421
        %v502 = vunpack.c.l.b16 %v422
        %v503 = vunpack.c.l.b16 %v423
        %v504 = vpack.c.b16 %v489, %v488
        %v505 = vpack.c.b16 %v491, %v490
        %v506 = vpack.c.b16 %v493, %v492
        %v507 = vpack.c.b16 %v495, %v494
        %v508 = vpack.c.b16 %v497, %v496
        %v509 = vpack.c.b16 %v499, %v498
        %v510 = vpack.c.b16 %v501, %v500
        %v511 = vpack.c.b16 %v503, %v502
        %520 = vmatprep.subr.bf16.mxu0 0
        %521 = vmatpush1.bf16.msra.mxu0 %v504
        %522 = vmatprep.subr.bf16.mxu0 0
        %523 = vmatpush1.bf16.msra.mxu0 %v505
        %524 = vmatprep.subr.bf16.mxu0 0
        %525 = vmatpush1.bf16.msra.mxu0 %v506
        %526 = vmatprep.subr.bf16.mxu0 0
        %527 = vmatpush1.bf16.msra.mxu0 %v507
        %528 = vmatprep.subr.bf16.mxu0 0
        %529 = vmatpush1.bf16.msra.mxu0 %v508
        %530 = vmatprep.subr.bf16.mxu0 0
        %531 = vmatpush1.bf16.msra.mxu0 %v509
        %532 = vmatprep.subr.bf16.mxu0 0
        %533 = vmatpush1.bf16.msra.mxu0 %v510
        %534 = vmatprep.subr.bf16.mxu0 0
        %535 = vmatpush1.bf16.msra.mxu0 %v511
        %536 = vmatprep.subr.bf16.mxu0 0
        %537 = vmatpush1.bf16.msra.mxu0 0
        %538 = vmatprep.subr.bf16.mxu0 0
        %539 = vmatpush1.bf16.msra.mxu0 0
        %540 = vmatprep.subr.bf16.mxu0 0
        %541 = vmatpush1.bf16.msra.mxu0 0
        %542 = vmatprep.subr.bf16.mxu0 0
        %543 = vmatpush1.bf16.msra.mxu0 0
        %544 = vmatprep.subr.bf16.mxu0 0
        %545 = vmatpush1.bf16.msra.mxu0 0
        %546 = vmatprep.subr.bf16.mxu0 0
        %547 = vmatpush1.bf16.msra.mxu0 0
        %548 = vmatprep.subr.bf16.mxu0 0
        %549 = vmatpush1.bf16.msra.mxu0 0
        %550 = vmatprep.subr.bf16.mxu0 0
        %551 = vmatpush1.bf16.msra.mxu0 0
        %552 = vmatprep.mubr.bf16.mxu0 0
        %553 = vmatmul.mubr.bf16.gmra.mrb[0].mxu0 %v456
        %v554 = vpop.f32.mrb[0].mxu0
        %v555 = vadd.f32 0.0, %v554
        %v556 = vpop.f32.mrb[0].mxu0
        %v557 = vpop.f32.mrb[0].mxu0
        %v558 = vadd.f32 0.0, %v557
        %v559 = vpop.f32.mrb[0].mxu0
        %560 = vmatprep.mubr.bf16.mxu0 0
        %561 = vmatmul.mubr.bf16.gmra.mrb[0].mxu0 %v457
        %v562 = vpop.f32.mrb[0].mxu0
        %v563 = vadd.f32 0.0, %v562
        %v564 = vpop.f32.mrb[0].mxu0
        %v565 = vpop.f32.mrb[0].mxu0
        %v566 = vadd.f32 0.0, %v565
        %v567 = vpop.f32.mrb[0].mxu0
        %568 = vmatprep.mubr.bf16.mxu0 0
        %569 = vmatmul.mubr.bf16.gmra.mrb[0].mxu0 %v458
        %v570 = vpop.f32.mrb[0].mxu0
        %v571 = vadd.f32 0.0, %v570
        %v572 = vpop.f32.mrb[0].mxu0
        %v573 = vpop.f32.mrb[0].mxu0
        %v574 = vadd.f32 0.0, %v573
        %v575 = vpop.f32.mrb[0].mxu0
        %576 = vmatprep.mubr.bf16.mxu0 0
        %577 = vmatmul.mubr.bf16.gmra.mrb[0].mxu0 %v459
        %v578 = vpop.f32.mrb[0].mxu0
        %v579 = vadd.f32 0.0, %v578
        %v580 = vpop.f32.mrb[0].mxu0
        %v581 = vpop.f32.mrb[0].mxu0
        %v582 = vadd.f32 0.0, %v581
        %v583 = vpop.f32.mrb[0].mxu0
        %584 = vmatprep.mubr.bf16.mxu0 0
        %585 = vmatmul.mubr.bf16.gmra.mrb[0].mxu0 %v460
        %v586 = vpop.f32.mrb[0].mxu0
        %v587 = vadd.f32 0.0, %v586
        %v588 = vpop.f32.mrb[0].mxu0
        %v589 = vpop.f32.mrb[0].mxu0
        %v590 = vadd.f32 0.0, %v589
        %v591 = vpop.f32.mrb[0].mxu0
        %592 = vmatprep.mubr.bf16.mxu0 0
        %593 = vmatmul.mubr.bf16.gmra.mrb[0].mxu0 %v461
        %v594 = vpop.f32.mrb[0].mxu0
        %v595 = vadd.f32 0.0, %v594
        %v596 = vpop.f32.mrb[0].mxu0
        %v597 = vpop.f32.mrb[0].mxu0
        %v598 = vadd.f32 0.0, %v597
        %v599 = vpop.f32.mrb[0].mxu0
        %600 = vmatprep.mubr.bf16.mxu0 0
        %601 = vmatmul.mubr.bf16.gmra.mrb[0].mxu0 %v462
        %v602 = vpop.f32.mrb[0].mxu0
        %v603 = vadd.f32 0.0, %v602
        %v604 = vpop.f32.mrb[0].mxu0
        %v605 = vpop.f32.mrb[0].mxu0
        %v606 = vadd.f32 0.0, %v605
        %v607 = vpop.f32.mrb[0].mxu0
        %608 = vmatprep.mubr.bf16.mxu0 0
        %609 = vmatmul.mubr.bf16.gmra.mrb[0].mxu0 %v463
        %v610 = vpop.f32.mrb[0].mxu0
        %v611 = vadd.f32 0.0, %v610
        %v612 = vpop.f32.mrb[0].mxu0
        %v613 = vpop.f32.mrb[0].mxu0
        %v614 = vadd.f32 0.0, %v613
        %v615 = vpop.f32.mrb[0].mxu0
        %616 = vdwg.mxu0
        %v617 = vadd.f32 %v376, %v555
        %v618 = vadd.f32 %v377, %v558
        %v619 = vadd.f32 %v378, %v563
        %v620 = vadd.f32 %v379, %v566
        %v621 = vadd.f32 %v380, %v571
        %v622 = vadd.f32 %v381, %v574
        %v623 = vadd.f32 %v382, %v579
        %v624 = vadd.f32 %v383, %v582
        %v625 = vadd.f32 %v384, %v587
        %v626 = vadd.f32 %v385, %v590
        %v627 = vadd.f32 %v386, %v595
        %v628 = vadd.f32 %v387, %v598
        %v629 = vadd.f32 %v388, %v603
        %v630 = vadd.f32 %v389, %v606
        %v631 = vadd.f32 %v390, %v611
        %v632 = vadd.f32 %v391, %v614
        %633 = vst [vmem:[#allocation2] sm:$0xff] %v617
        %634 = vst [vmem:[#allocation2 + $0x8] sm:$0xff] %v618
        %635 = vst [vmem:[#allocation2 + $0x10] sm:$0xff] %v619
        %636 = vst [vmem:[#allocation2 + $0x18] sm:$0xff] %v620
        %637 = vst [vmem:[#allocation2 + $0x20] sm:$0xff] %v621
        %638 = vst [vmem:[#allocation2 + $0x28] sm:$0xff] %v622
        %639 = vst [vmem:[#allocation2 + $0x30] sm:$0xff] %v623
        %640 = vst [vmem:[#allocation2 + $0x38] sm:$0xff] %v624
        %641 = vst [vmem:[#allocation2 + $0x40] sm:$0xff] %v625
        %642 = vst [vmem:[#allocation2 + $0x48] sm:$0xff] %v626
        %643 = vst [vmem:[#allocation2 + $0x50] sm:$0xff] %v627
        %644 = vst [vmem:[#allocation2 + $0x58] sm:$0xff] %v628
        %645 = vst [vmem:[#allocation2 + $0x60] sm:$0xff] %v629
        %646 = vst [vmem:[#allocation2 + $0x68] sm:$0xff] %v630
        %647 = vst [vmem:[#allocation2 + $0x70] sm:$0xff] %v631
        %648 = vst [vmem:[#allocation2 + $0x78] sm:$0xff] %v632
        %p649 = scmp.eq.s32.totalorder %s31, 1
        // Predicated region
        $region61: #{tpu_custom_call.1} parent=39 // pred_check
          %p650 = pneg %p649
        $region62: #{tpu_custom_call.1} parent=39 // pred_check_branch
          %652 = sbr.rel (%p650) target = $region64
        $region63: #{tpu_custom_call.1} parent=39 // pred_region
          %v653 = vld [vmem:[#allocation2] sm:$0xff]
          %v654 = vld [vmem:[#allocation2 + $0x8] sm:$0xff]
          %v655 = vld [vmem:[#allocation2 + $0x10] sm:$0xff]
          %v656 = vld [vmem:[#allocation2 + $0x18] sm:$0xff]
          %v657 = vld [vmem:[#allocation2 + $0x20] sm:$0xff]
          %v658 = vld [vmem:[#allocation2 + $0x28] sm:$0xff]
          %v659 = vld [vmem:[#allocation2 + $0x30] sm:$0xff]
          %v660 = vld [vmem:[#allocation2 + $0x38] sm:$0xff]
          %v661 = vld [vmem:[#allocation2 + $0x40] sm:$0xff]
          %v662 = vld [vmem:[#allocation2 + $0x48] sm:$0xff]
          %v663 = vld [vmem:[#allocation2 + $0x50] sm:$0xff]
          %v664 = vld [vmem:[#allocation2 + $0x58] sm:$0xff]
          %v665 = vld [vmem:[#allocation2 + $0x60] sm:$0xff]
          %v666 = vld [vmem:[#allocation2 + $0x68] sm:$0xff]
          %v667 = vld [vmem:[#allocation2 + $0x70] sm:$0xff]
          %v668 = vld [vmem:[#allocation2 + $0x78] sm:$0xff]
          %v669 = vld [vmem:[%s310] sm:$0xf]
          %v670 = vld [vmem:[%s310 + $0x4] sm:$0xf]
          %v671 = vld [vmem:[%s310 + $0x8] sm:$0xf]
          %v672 = vld [vmem:[%s310 + $0xc] sm:$0xf]
          %v673 = vld [vmem:[%s310 + $0x10] sm:$0xf]
          %v674 = vld [vmem:[%s310 + $0x14] sm:$0xf]
          %v675 = vld [vmem:[%s310 + $0x18] sm:$0xf]
          %v676 = vld [vmem:[%s310 + $0x1c] sm:$0xf]
          %v677 = vld [vmem:[%s310 + $0x20] sm:$0xf]
          %v678 = vld [vmem:[%s310 + $0x24] sm:$0xf]
          %v679 = vld [vmem:[%s310 + $0x28] sm:$0xf]
          %v680 = vld [vmem:[%s310 + $0x2c] sm:$0xf]
          %v681 = vld [vmem:[%s310 + $0x30] sm:$0xf]
          %v682 = vld [vmem:[%s310 + $0x34] sm:$0xf]
          %v683 = vld [vmem:[%s310 + $0x38] sm:$0xf]
          %v684 = vld [vmem:[%s310 + $0x3c] sm:$0xf]
          %v685 = vunpack.c.l.bf16 %v669
          %v686 = vunpack.c.l.bf16 %v670
          %v687 = vunpack.c.l.bf16 %v671
          %v688 = vunpack.c.l.bf16 %v672
          %v689 = vunpack.c.l.bf16 %v673
          %v690 = vunpack.c.l.bf16 %v674
          %v691 = vunpack.c.l.bf16 %v675
          %v692 = vunpack.c.l.bf16 %v676
          %v693 = vunpack.c.l.bf16 %v677
          %v694 = vunpack.c.l.bf16 %v678
          %v695 = vunpack.c.l.bf16 %v679
          %v696 = vunpack.c.l.bf16 %v680
          %v697 = vunpack.c.l.bf16 %v681
          %v698 = vunpack.c.l.bf16 %v682
          %v699 = vunpack.c.l.bf16 %v683
          %v700 = vunpack.c.l.bf16 %v684
          %v701 = vld [vmem:[#allocation9] sm:$0xff]
          %v702 = vld [vmem:[#allocation9 + $0x8] sm:$0xff]
          %v703 = vld [vmem:[#allocation9 + $0x10] sm:$0xff]
          %v704 = vld [vmem:[#allocation9 + $0x18] sm:$0xff]
          %v705 = vld [vmem:[#allocation9 + $0x20] sm:$0xff]
          %v706 = vld [vmem:[#allocation9 + $0x28] sm:$0xff]
          %v707 = vld [vmem:[#allocation9 + $0x30] sm:$0xff]
          %v708 = vld [vmem:[#allocation9 + $0x38] sm:$0xff]
          %v709 = vld [vmem:[#allocation9 + $0x40] sm:$0xff]
          %v710 = vld [vmem:[#allocation9 + $0x48] sm:$0xff]
          %v711 = vld [vmem:[#allocation9 + $0x50] sm:$0xff]
          %v712 = vld [vmem:[#allocation9 + $0x58] sm:$0xff]
          %v713 = vld [vmem:[#allocation9 + $0x60] sm:$0xff]
          %v714 = vld [vmem:[#allocation9 + $0x68] sm:$0xff]
          %v715 = vld [vmem:[#allocation9 + $0x70] sm:$0xff]
          %v716 = vld [vmem:[#allocation9 + $0x78] sm:$0xff]
          %v717 = vld [vmem:[#allocation9 + $0x80] sm:$0xff]
          %v718 = vld [vmem:[#allocation9 + $0x88] sm:$0xff]
          %v719 = vld [vmem:[#allocation9 + $0x90] sm:$0xff]
          %v720 = vld [vmem:[#allocation9 + $0x98] sm:$0xff]
          %v721 = vld [vmem:[#allocation9 + $0xa0] sm:$0xff]
          %v722 = vld [vmem:[#allocation9 + $0xa8] sm:$0xff]
          %v723 = vld [vmem:[#allocation9 + $0xb0] sm:$0xff]
          %v724 = vld [vmem:[#allocation9 + $0xb8] sm:$0xff]
          %v725 = vld [vmem:[#allocation9 + $0xc0] sm:$0xff]
          %v726 = vld [vmem:[#allocation9 + $0xc8] sm:$0xff]
          %v727 = vld [vmem:[#allocation9 + $0xd0] sm:$0xff]
          %v728 = vld [vmem:[#allocation9 + $0xd8] sm:$0xff]
          %v729 = vld [vmem:[#allocation9 + $0xe0] sm:$0xff]
          %v730 = vld [vmem:[#allocation9 + $0xe8] sm:$0xff]
          %v731 = vld [vmem:[#allocation9 + $0xf0] sm:$0xff]
          %v732 = vld [vmem:[#allocation9 + $0xf8] sm:$0xff]
          %v733 = vld [vmem:[%s4] sm:$0x1]
          %v735 = vlaneseq
          %v736 = vshrl.u32 %v735, 7
          %v737 = vsub.s32 0, %v736
          %v738 = vrot.slane %v733, %v737
          %740 = vmatprep.subr.mxu0 0.0
          %741 = vmatpush1.msra.mxu0 %v701
          %742 = vmatprep.subr.mxu0 0.0
          %743 = vmatpush1.msra.mxu0 %v702
          %744 = vmatprep.subr.mxu0 0.0
          %745 = vmatpush1.msra.mxu0 %v703
          %746 = vmatprep.subr.mxu0 0.0
          %747 = vmatpush1.msra.mxu0 %v704
          %748 = vmatprep.subr.mxu0 0.0
          %749 = vmatpush1.msra.mxu0 %v705
          %750 = vmatprep.subr.mxu0 0.0
          %751 = vmatpush1.msra.mxu0 %v706
          %752 = vmatprep.subr.mxu0 0.0
          %753 = vmatpush1.msra.mxu0 %v707
          %754 = vmatprep.subr.mxu0 0.0
          %755 = vmatpush1.msra.mxu0 %v708
          %756 = vmatprep.subr.mxu0 0.0
          %757 = vmatpush1.msra.mxu0 %v709
          %758 = vmatprep.subr.mxu0 0.0
          %759 = vmatpush1.msra.mxu0 %v710
          %760 = vmatprep.subr.mxu0 0.0
          %761 = vmatpush1.msra.mxu0 %v711
          %762 = vmatprep.subr.mxu0 0.0
          %763 = vmatpush1.msra.mxu0 %v712
          %764 = vmatprep.subr.mxu0 0.0
          %765 = vmatpush1.msra.mxu0 %v713
          %766 = vmatprep.subr.mxu0 0.0
          %767 = vmatpush1.msra.mxu0 %v714
          %768 = vmatprep.subr.mxu0 0.0
          %769 = vmatpush1.msra.mxu0 %v715
          %770 = vmatprep.subr.mxu0 0.0
          %771 = vmatpush1.msra.mxu0 %v716
          %772 = vmatprep.subr.mxu0 0.0
          %773 = vmatpush1.msra.mxu0 %v717
          %774 = vmatprep.subr.mxu0 0.0
          %775 = vmatpush1.msra.mxu0 %v718
          %776 = vmatprep.subr.mxu0 0.0
          %777 = vmatpush1.msra.mxu0 %v719
          %778 = vmatprep.subr.mxu0 0.0
          %779 = vmatpush1.msra.mxu0 %v720
          %780 = vmatprep.subr.mxu0 0.0
          %781 = vmatpush1.msra.mxu0 %v721
          %782 = vmatprep.subr.mxu0 0.0
          %783 = vmatpush1.msra.mxu0 %v722
          %784 = vmatprep.subr.mxu0 0.0
          %785 = vmatpush1.msra.mxu0 %v723
          %786 = vmatprep.subr.mxu0 0.0
          %787 = vmatpush1.msra.mxu0 %v724
          %788 = vmatprep.subr.mxu0 0.0
          %789 = vmatpush1.msra.mxu0 %v725
          %790 = vmatprep.subr.mxu0 0.0
          %791 = vmatpush1.msra.mxu0 %v726
          %792 = vmatprep.subr.mxu0 0.0
          %793 = vmatpush1.msra.mxu0 %v727
          %794 = vmatprep.subr.mxu0 0.0
          %795 = vmatpush1.msra.mxu0 %v728
          %796 = vmatprep.subr.mxu0 0.0
          %797 = vmatpush1.msra.mxu0 %v729
          %798 = vmatprep.subr.mxu0 0.0
          %799 = vmatpush1.msra.mxu0 %v730
          %800 = vmatprep.subr.mxu0 0.0
          %801 = vmatpush1.msra.mxu0 %v731
          %802 = vmatprep.subr.mxu0 0.0
          %803 = vmatpush1.msra.mxu0 %v732
          %804 = vmatprep.mubr.f32.mxu0 %v685
          %805 = vmatmul.mubr.f32.gmra.mrb[0].mxu0 %v653
          %v806 = vpop.f32.mrb[0].mxu0
          %v807 = vadd.f32 %v738, %v806
          %v808 = vpop.f32.mrb[0].mxu0
          %809 = vmatprep.mubr.f32.mxu0 %v686
          %810 = vmatmul.mubr.f32.gmra.mrb[0].mxu0 %v654
          %v811 = vpop.f32.mrb[0].mxu0
          %v812 = vadd.f32 %v738, %v811
          %v813 = vpop.f32.mrb[0].mxu0
          %814 = vmatprep.mubr.f32.mxu0 %v687
          %815 = vmatmul.mubr.f32.gmra.mrb[0].mxu0 %v655
          %v816 = vpop.f32.mrb[0].mxu0
          %v817 = vadd.f32 %v738, %v816
          %v818 = vpop.f32.mrb[0].mxu0
          %819 = vmatprep.mubr.f32.mxu0 %v688
          %820 = vmatmul.mubr.f32.gmra.mrb[0].mxu0 %v656
          %v821 = vpop.f32.mrb[0].mxu0
          %v822 = vadd.f32 %v738, %v821
          %v823 = vpop.f32.mrb[0].mxu0
          %824 = vmatprep.mubr.f32.mxu0 %v689
          %825 = vmatmul.mubr.f32.gmra.mrb[0].mxu0 %v657
          %v826 = vpop.f32.mrb[0].mxu0
          %v827 = vadd.f32 %v738, %v826
          %v828 = vpop.f32.mrb[0].mxu0
          %829 = vmatprep.mubr.f32.mxu0 %v690
          %830 = vmatmul.mubr.f32.gmra.mrb[0].mxu0 %v658
          %v831 = vpop.f32.mrb[0].mxu0
          %v832 = vadd.f32 %v738, %v831
          %v833 = vpop.f32.mrb[0].mxu0
          %834 = vmatprep.mubr.f32.mxu0 %v691
          %835 = vmatmul.mubr.f32.gmra.mrb[0].mxu0 %v659
          %v836 = vpop.f32.mrb[0].mxu0
          %v837 = vadd.f32 %v738, %v836
          %v838 = vpop.f32.mrb[0].mxu0
          %839 = vmatprep.mubr.f32.mxu0 %v692
          %840 = vmatmul.mubr.f32.gmra.mrb[0].mxu0 %v660
          %v841 = vpop.f32.mrb[0].mxu0
          %v842 = vadd.f32 %v738, %v841
          %v843 = vpop.f32.mrb[0].mxu0
          %844 = vmatprep.mubr.f32.mxu0 %v693
          %845 = vmatmul.mubr.f32.gmra.mrb[0].mxu0 %v661
          %v846 = vpop.f32.mrb[0].mxu0
          %v847 = vadd.f32 %v738, %v846
          %v848 = vpop.f32.mrb[0].mxu0
          %849 = vmatprep.mubr.f32.mxu0 %v694
          %850 = vmatmul.mubr.f32.gmra.mrb[0].mxu0 %v662
          %v851 = vpop.f32.mrb[0].mxu0
          %v852 = vadd.f32 %v738, %v851
          %v853 = vpop.f32.mrb[0].mxu0
          %854 = vmatprep.mubr.f32.mxu0 %v695
          %855 = vmatmul.mubr.f32.gmra.mrb[0].mxu0 %v663
          %v856 = vpop.f32.mrb[0].mxu0
          %v857 = vadd.f32 %v738, %v856
          %v858 = vpop.f32.mrb[0].mxu0
          %859 = vmatprep.mubr.f32.mxu0 %v696
          %860 = vmatmul.mubr.f32.gmra.mrb[0].mxu0 %v664
          %v861 = vpop.f32.mrb[0].mxu0
          %v862 = vadd.f32 %v738, %v861
          %v863 = vpop.f32.mrb[0].mxu0
          %864 = vmatprep.mubr.f32.mxu0 %v697
          %865 = vmatmul.mubr.f32.gmra.mrb[0].mxu0 %v665
          %v866 = vpop.f32.mrb[0].mxu0
          %v867 = vadd.f32 %v738, %v866
          %v868 = vpop.f32.mrb[0].mxu0
          %869 = vmatprep.mubr.f32.mxu0 %v698
          %870 = vmatmul.mubr.f32.gmra.mrb[0].mxu0 %v666
          %v871 = vpop.f32.mrb[0].mxu0
          %v872 = vadd.f32 %v738, %v871
          %v873 = vpop.f32.mrb[0].mxu0
          %874 = vmatprep.mubr.f32.mxu0 %v699
          %875 = vmatmul.mubr.f32.gmra.mrb[0].mxu0 %v667
          %v876 = vpop.f32.mrb[0].mxu0
          %v877 = vadd.f32 %v738, %v876
          %v878 = vpop.f32.mrb[0].mxu0
          %879 = vmatprep.mubr.f32.mxu0 %v700
          %880 = vmatmul.mubr.f32.gmra.mrb[0].mxu0 %v668
          %v881 = vpop.f32.mrb[0].mxu0
          %v882 = vadd.f32 %v738, %v881
          %v883 = vpop.f32.mrb[0].mxu0
          %884 = vdwg.mxu0
          %v885 = vmax.f32 %v807, 0.0
          %v886 = vmax.f32 %v812, 0.0
          %v887 = vmax.f32 %v817, 0.0
          %v888 = vmax.f32 %v822, 0.0
          %v889 = vmax.f32 %v827, 0.0
          %v890 = vmax.f32 %v832, 0.0
          %v891 = vmax.f32 %v837, 0.0
          %v892 = vmax.f32 %v842, 0.0
          %v893 = vmax.f32 %v847, 0.0
          %v894 = vmax.f32 %v852, 0.0
          %v895 = vmax.f32 %v857, 0.0
          %v896 = vmax.f32 %v862, 0.0
          %v897 = vmax.f32 %v867, 0.0
          %v898 = vmax.f32 %v872, 0.0
          %v899 = vmax.f32 %v877, 0.0
          %v900 = vmax.f32 %v882, 0.0
          %901 = vst [vmem:[%s350] sm:$0xff] %v885
          %902 = vst [vmem:[%s350 + $0x8] sm:$0xff] %v886
          %903 = vst [vmem:[%s350 + $0x10] sm:$0xff] %v887
          %904 = vst [vmem:[%s350 + $0x18] sm:$0xff] %v888
          %905 = vst [vmem:[%s350 + $0x20] sm:$0xff] %v889
          %906 = vst [vmem:[%s350 + $0x28] sm:$0xff] %v890
          %907 = vst [vmem:[%s350 + $0x30] sm:$0xff] %v891
          %908 = vst [vmem:[%s350 + $0x38] sm:$0xff] %v892
          %909 = vst [vmem:[%s350 + $0x40] sm:$0xff] %v893
          %910 = vst [vmem:[%s350 + $0x48] sm:$0xff] %v894
          %911 = vst [vmem:[%s350 + $0x50] sm:$0xff] %v895
          %912 = vst [vmem:[%s350 + $0x58] sm:$0xff] %v896
          %913 = vst [vmem:[%s350 + $0x60] sm:$0xff] %v897
          %914 = vst [vmem:[%s350 + $0x68] sm:$0xff] %v898
          %915 = vst [vmem:[%s350 + $0x70] sm:$0xff] %v899
          %916 = vst [vmem:[%s350 + $0x78] sm:$0xff] %v900
        $region64: #{tpu_custom_call.1} parent=39 // pred_fallthru
          _
        %s917 = sand.u32 %s168, 1
        %s918 = scalar_lea.sflag [#allocation5], %s917
        %s919 = sand.u32 %s168, 1
        %s920 = smul.addr %s919, 128
        %s921 = scalar_lea.vmem [#allocation11], %s920
        // Predicated region
        $region65: #{tpu_custom_call.1} parent=39 // pred_check
          %p922 = pneg %p178
        $region66: #{tpu_custom_call.1} parent=39 // pred_check_branch
          %924 = sbr.rel (%p922) target = $region68
        $region67: #{tpu_custom_call.1} parent=39 // pred_region
          %s925 = smul.u32 16, %s30
          %s927 = ssub.s32 2048, 2048
          %928 = vsyncadd %s918, %s927
          %s929 = smul.addr %s925, 128
          %s930 = scalar_lea.hbm %s5, %s929
          %s931 = sshll.u32 %s921, 4
          %s932 = int_to_ptr.vmem [resolvable:$true] %s931
          %937 = dma.vmem_to_hbm [thread:$0]  %s932, 2048, %s930, %s918, 128, 128, 8
        $region68: #{tpu_custom_call.1} parent=39 // pred_fallthru
          _
      $region40: #{tpu_custom_call.1} parent=5 // pred_fallthru
        _
      %p938 = scmp.le.s32.totalorder 2, %s21
      // Predicated region
      $region69: #{tpu_custom_call.1} parent=5 // pred_check
        %p939 = pneg %p938
      $region70: #{tpu_custom_call.1} parent=5 // pred_check_branch
        %941 = sbr.rel (%p939) target = $region72
      $region71: #{tpu_custom_call.1} parent=5 // pred_region
        %s942 = ssub.s32 %s21, 2
        // Predicated region
        $region73: #{tpu_custom_call.1} parent=71 // pred_check
          %p943 = pneg %p184
        $region74: #{tpu_custom_call.1} parent=71 // pred_check_branch
          %945 = sbr.rel (%p943) target = $region76
        $region75: #{tpu_custom_call.1} parent=71 // pred_region
          %s946 = sand.u32 %s169, 1
          %s947 = scalar_lea.sflag [#allocation5], %s946
          %s948 = sand.u32 %s169, 1
          %s949 = smul.addr %s948, 128
          %s950 = scalar_lea.vmem [#allocation11], %s949
          %951 = dma.done %s947, 2048
        $region76: #{tpu_custom_call.1} parent=71 // pred_fallthru
          _
      $region72: #{tpu_custom_call.1} parent=5 // pred_fallthru
        _
    $region6: #{tpu_custom_call.1} parent=1 // loop_footer
      %s25 = sadd.s32 1, %s21
    $region7: #{tpu_custom_call.1} parent=1 // loop_footer_branch
      %20 = sbr.rel target = $region3
    $region8: #{tpu_custom_call.1} parent=1 // loop_exit
      _
    %952 = vsyncpa [#allocation4], 1
    %s953 = scalar_lea.sflag [#allocation4], 1
    %954 = vsyncpa %s953, 1
    %955 = vsyncpa [#allocation7], 1
    %s956 = scalar_lea.sflag [#allocation7], 1
    %957 = vsyncpa %s956, 1
    %958 = vsyncpa [#allocation10], 1
    %959 = vsyncpa [#allocation5], 1
    %s960 = scalar_lea.sflag [#allocation5], 1
    %961 = vsyncpa %s960, 1

</llo_original>
